<compile_context>
chip_gen: v7x
topology: tpu7x:2x2x1
jax: 0.10.0
libtpu: 0.0.40
codegen_flags: <defaults>
</compile_context>

<pallas_src>
import jax
import jax.numpy as jnp
from jax.experimental import pallas as pl
from jax.experimental.pallas import tpu as pltpu

_LANE = 128
_MAX_TILE = 2048  # row-tile cap; ~15 MiB VMEM double-buffered at f32


def _round_up(x, m):
    return (x + m - 1) // m * m


# ---------------------------------------------------------------------------
# Fused kernel: object MLP (run on sf and of with resident weights) + predicate
# path, all scores packed into one lane-dense (tile, 128) output block.
# ---------------------------------------------------------------------------
def _fused_kernel(sf_ref, of_ref, pvf_ref, ppf_ref,
                  w1_ref, b1_ref, w2s_ref, w2o_ref,
                  wv_ref, bv_ref, wfv_ref, wfp_ref, bf_ref, wp_ref,
                  out_ref):
    w1 = w1_ref[...]
    b1 = b1_ref[...]

    # --- object path: Linear -> Dropout(identity) -> ReLU -> Linear(no bias) ---
    s_h = jnp.maximum(
        jnp.dot(sf_ref[...], w1, preferred_element_type=jnp.float32) + b1, 0.0)
    o_h = jnp.maximum(
        jnp.dot(of_ref[...], w1, preferred_element_type=jnp.float32) + b1, 0.0)

    # --- predicate path ---
    # pvf_emb = ReLU(pvf @ Wv + bv)            (Dropout = identity, eval mode)
    pvf_emb = jnp.maximum(
        jnp.dot(pvf_ref[...], wv_ref[...], preferred_element_type=jnp.float32)
        + bv_ref[...], 0.0)
    # concat(pvf_emb, ppf) @ Wf == pvf_emb @ Wf[:H] + ppf @ Wf[H:]   (exact)
    pf_emb = jnp.maximum(
        jnp.dot(pvf_emb, wfv_ref[...], preferred_element_type=jnp.float32)
        + jnp.dot(ppf_ref[...], wfp_ref[...], preferred_element_type=jnp.float32)
        + bf_ref[...], 0.0)

    # Final-layer weights are pre-packed into disjoint column ranges of (H, 128)
    # slabs, so the sum of the three matmuls directly produces
    # [s_score | o_score | p_score | zeros] as one full-width store.
    out_ref[...] = (
        jnp.dot(s_h, w2s_ref[...], preferred_element_type=jnp.float32)
        + jnp.dot(o_h, w2o_ref[...], preferred_element_type=jnp.float32)
        + jnp.dot(pf_emb, wp_ref[...], preferred_element_type=jnp.float32))


# ---------------------------------------------------------------------------
# Parameter setup
# ---------------------------------------------------------------------------
def init_params(key, *, object_num, obj_feature_dim, pred_vis_feature_dim,
                pred_pos_feature_dim, predicate_num, hidden_dim):
    """Deterministic init. PyTorch-shaped weights are [out, in]."""
    ks = jax.random.split(key, 7)
    s = 0.05
    return {
        "obj_w1": s * jax.random.normal(ks[0], (hidden_dim, obj_feature_dim), jnp.float32),
        "obj_b1": s * jax.random.normal(ks[1], (hidden_dim,), jnp.float32),
        "obj_w2": s * jax.random.normal(ks[2], (object_num + 1, hidden_dim), jnp.float32),
        "pv_w":   s * jax.random.normal(ks[3], (hidden_dim, pred_vis_feature_dim), jnp.float32),
        "pv_b":   s * jax.random.normal(ks[4], (hidden_dim,), jnp.float32),
        "pf_w":   s * jax.random.normal(ks[5], (hidden_dim, hidden_dim + pred_pos_feature_dim), jnp.float32),
        "pf_b":   s * jax.random.normal(ks[6], (hidden_dim,), jnp.float32),
        "pp_w":   s * jax.random.normal(jax.random.fold_in(key, 99), (predicate_num, hidden_dim), jnp.float32),
    }


def prepare_params(params, hidden_dim):
    """One-time glue (at param-load time, NOT per forward): transpose [out,in] ->
    [in,out], split the concat weight, reshape biases to [1,H], and pack the
    final-layer weights into disjoint column ranges of lane-dense (H,128) slabs:
      cols [0, C_obj)            -> subject scores
      cols [C_obj, 2*C_obj)      -> object scores
      cols [2*C_obj, 2*C_obj+Cp) -> predicate scores
    """
    c_obj = params["obj_w2"].shape[0]     # object_num + 1
    c_pred = params["pp_w"].shape[0]      # predicate_num
    assert 2 * c_obj + c_pred <= _LANE, "packed scores must fit one 128-lane slab"

    def col_packed(w_t, col0):            # w_t: (H, C)
        slab = jnp.zeros((w_t.shape[0], _LANE), w_t.dtype)
        return slab.at[:, col0:col0 + w_t.shape[1]].set(w_t)

    prepared = {
        "obj_w1_t": params["obj_w1"].T,                  # (D_obj, H)
        "obj_b1":   params["obj_b1"][None, :],           # (1, H)
        "w2_s":     col_packed(params["obj_w2"].T, 0),           # (H, 128)
        "w2_o":     col_packed(params["obj_w2"].T, c_obj),       # (H, 128)
        "pv_w_t":   params["pv_w"].T,                    # (D_vis, H)
        "pv_b":     params["pv_b"][None, :],             # (1, H)
        "pf_w_v_t": params["pf_w"][:, :hidden_dim].T,    # (H, H)
        "pf_w_p_t": params["pf_w"][:, hidden_dim:].T,    # (D_pos, H)
        "pf_b":     params["pf_b"][None, :],             # (1, H)
        "wp":       col_packed(params["pp_w"].T, 2 * c_obj),     # (H, 128)
    }
    prepared = jax.tree_util.tree_map(jnp.asarray, prepared)
    return prepared, c_obj, c_pred


# ---------------------------------------------------------------------------
# Forward
# ---------------------------------------------------------------------------
def forward(prepared, inp_sf, inp_of, inp_ppf, inp_pvf, *, n_obj_classes, n_pred_classes):
    n, d_obj = inp_sf.shape
    d_vis = inp_pvf.shape[1]
    d_pos = inp_ppf.shape[1]
    h = prepared["obj_w1_t"].shape[1]

    # Row tile: aim for >=2 grid steps whenever possible (v7x megacore sharding),
    # cap at _MAX_TILE, keep padding in the (partial) last block under 8 rows.
    # No wrapper-side jnp.pad of the inputs.
    if n > 8:
        target_steps = max(2, pl.cdiv(n, _MAX_TILE))
    else:
        target_steps = 1
    tile = min(_MAX_TILE, _round_up(pl.cdiv(n, target_steps), 8))
    num_blocks = pl.cdiv(n, tile)
    rows_pad = num_blocks * tile       # output rows; garbage rows sliced off below

    weight_bytes = 4 * sum(int(v.size) for v in prepared.values())
    flops = 2 * rows_pad * (2 * d_obj * h + d_vis * h + h * h + d_pos * h + 3 * h * _LANE)
    bytes_accessed = 4 * rows_pad * (2 * d_obj + d_vis + d_pos + _LANE) + weight_bytes

    out_pad = pl.pallas_call(
        _fused_kernel,
        out_shape=jax.ShapeDtypeStruct((rows_pad, _LANE), jnp.float32),
        grid_spec=pltpu.PrefetchScalarGridSpec(
            num_scalar_prefetch=0,
            grid=(num_blocks,),
            in_specs=[
                pl.BlockSpec((tile, d_obj), lambda i: (i, 0)),   # inp_sf
                pl.BlockSpec((tile, d_obj), lambda i: (i, 0)),   # inp_of
                pl.BlockSpec((tile, d_vis), lambda i: (i, 0)),   # inp_pvf
                pl.BlockSpec((tile, d_pos), lambda i: (i, 0)),   # inp_ppf
                pl.BlockSpec((d_obj, h), lambda i: (0, 0)),      # obj_w1_t (resident)
                pl.BlockSpec((1, h), lambda i: (0, 0)),          # obj_b1
                pl.BlockSpec((h, _LANE), lambda i: (0, 0)),      # w2_s (col-packed)
                pl.BlockSpec((h, _LANE), lambda i: (0, 0)),      # w2_o (col-packed)
                pl.BlockSpec((d_vis, h), lambda i: (0, 0)),      # pv_w_t
                pl.BlockSpec((1, h), lambda i: (0, 0)),          # pv_b
                pl.BlockSpec((h, h), lambda i: (0, 0)),          # pf_w_v_t
                pl.BlockSpec((d_pos, h), lambda i: (0, 0)),      # pf_w_p_t
                pl.BlockSpec((1, h), lambda i: (0, 0)),          # pf_b
                pl.BlockSpec((h, _LANE), lambda i: (0, 0)),      # wp (col-packed)
            ],
            out_specs=pl.BlockSpec((tile, _LANE), lambda i: (i, 0)),
        ),
        compiler_params=pltpu.CompilerParams(
            dimension_semantics=("parallel",),
            vmem_limit_bytes=48 * 1024 * 1024),
        cost_estimate=pl.CostEstimate(flops=flops, transcendentals=0,
                                      bytes_accessed=bytes_accessed),
    )(inp_sf, inp_of, inp_pvf, inp_ppf,
      prepared["obj_w1_t"], prepared["obj_b1"], prepared["w2_s"], prepared["w2_o"],
      prepared["pv_w_t"], prepared["pv_b"],
      prepared["pf_w_v_t"], prepared["pf_w_p_t"], prepared["pf_b"],
      prepared["wp"])

    s_score = out_pad[:n, 0:n_obj_classes]
    o_score = out_pad[:n, n_obj_classes:2 * n_obj_classes]
    p_score = out_pad[:n, 2 * n_obj_classes:2 * n_obj_classes + n_pred_classes]
    return s_score, o_score, p_score


def forward_ref(params, inp_sf, inp_of, inp_ppf, inp_pvf):
    """Pure-JAX reference (matches PyTorch eval forward)."""
    def obj_pred(x):
        hh = jnp.maximum(x @ params["obj_w1"].T + params["obj_b1"], 0.0)
        return hh @ params["obj_w2"].T

    s_score = obj_pred(inp_sf)
    o_score = obj_pred(inp_of)
    pvf_emb = jnp.maximum(inp_pvf @ params["pv_w"].T + params["pv_b"], 0.0)
    cat = jnp.concatenate([pvf_emb, inp_ppf], axis=1)
    pf_emb = jnp.maximum(cat @ params["pf_w"].T + params["pf_b"], 0.0)
    p_score = pf_emb @ params["pp_w"].T
    return s_score, o_score, p_score


# ---------------------------------------------------------------------------
if __name__ == "__main__":
    object_num = 10            # -> object logits have object_num + 1 = 11 classes
    obj_feature_dim = 32
    pred_vis_feature_dim = 48
    pred_pos_feature_dim = 16
    predicate_num = 12
    hidden_dim = 32
    n_pairs = 8                # batch of candidate (subject, object) pairs

    key = jax.random.PRNGKey(0)
    kp, k1, k2, k3, k4 = jax.random.split(key, 5)

    params = init_params(
        kp,
        object_num=object_num,
        obj_feature_dim=obj_feature_dim,
        pred_vis_feature_dim=pred_vis_feature_dim,
        pred_pos_feature_dim=pred_pos_feature_dim,
        predicate_num=predicate_num,
        hidden_dim=hidden_dim,
    )
    # One-time weight prep (transpose / split / column-pack) — out of the hot path.
    prepared, c_obj, c_pred = prepare_params(params, hidden_dim)

    inp_sf = jax.random.normal(k1, (n_pairs, obj_feature_dim), jnp.float32)
    inp_of = jax.random.normal(k2, (n_pairs, obj_feature_dim), jnp.float32)
    inp_ppf = jax.random.normal(k3, (n_pairs, pred_pos_feature_dim), jnp.float32)
    inp_pvf = jax.random.normal(k4, (n_pairs, pred_vis_feature_dim), jnp.float32)

    s_score, o_score, p_score = forward(prepared, inp_sf, inp_of, inp_ppf, inp_pvf,
                                        n_obj_classes=c_obj, n_pred_classes=c_pred)
    jax.block_until_ready((s_score, o_score, p_score))

    # Correctness check against pure-JAX reference.
    s_ref, o_ref, p_ref = forward_ref(params, inp_sf, inp_of, inp_ppf, inp_pvf)
    assert s_score.shape == (n_pairs, object_num + 1)
    assert o_score.shape == (n_pairs, object_num + 1)
    assert p_score.shape == (n_pairs, predicate_num)
    assert jnp.allclose(s_score, s_ref, atol=1e-5, rtol=1e-5)
    assert jnp.allclose(o_score, o_ref, atol=1e-5, rtol=1e-5)
    assert jnp.allclose(p_score, p_ref, atol=1e-5, rtol=1e-5)

    print("KERNEL_OK")
</pallas_src>

<mosaic_0001>
module attributes {stable_mosaic.version = 11 : i64} {
  func.func @_fused_kernel(%arg0: i32, %arg1: memref<8x32xf32, #tpu.memory_space<vmem>>, %arg2: memref<8x32xf32, #tpu.memory_space<vmem>>, %arg3: memref<8x48xf32, #tpu.memory_space<vmem>>, %arg4: memref<8x16xf32, #tpu.memory_space<vmem>>, %arg5: memref<32x32xf32, #tpu.memory_space<vmem>>, %arg6: memref<1x32xf32, #tpu.memory_space<vmem>>, %arg7: memref<32x128xf32, #tpu.memory_space<vmem>>, %arg8: memref<32x128xf32, #tpu.memory_space<vmem>>, %arg9: memref<48x32xf32, #tpu.memory_space<vmem>>, %arg10: memref<1x32xf32, #tpu.memory_space<vmem>>, %arg11: memref<32x32xf32, #tpu.memory_space<vmem>>, %arg12: memref<16x32xf32, #tpu.memory_space<vmem>>, %arg13: memref<1x32xf32, #tpu.memory_space<vmem>>, %arg14: memref<32x128xf32, #tpu.memory_space<vmem>>, %arg15: memref<8x128xf32, #tpu.memory_space<vmem>>) attributes {dimension_semantics = [#tpu.dimension_semantics<parallel>], iteration_bounds = array<i64: 1>, scalar_prefetch = 0 : i64, scratch_operands = 0 : i64, tpu.core_type = #tpu.core_type<tc>, window_params = [{transform_indices = @transform_0, window_bounds = array<i64: 8, 32>}, {transform_indices = @transform_1, window_bounds = array<i64: 8, 32>}, {transform_indices = @transform_2, window_bounds = array<i64: 8, 48>}, {transform_indices = @transform_3, window_bounds = array<i64: 8, 16>}, {pipeline_mode = #tpu.pipeline_mode<synchronous>, transform_indices = @transform_4, window_bounds = array<i64: 32, 32>}, {pipeline_mode = #tpu.pipeline_mode<synchronous>, transform_indices = @transform_5, window_bounds = array<i64: 1, 32>}, {pipeline_mode = #tpu.pipeline_mode<synchronous>, transform_indices = @transform_6, window_bounds = array<i64: 32, 128>}, {pipeline_mode = #tpu.pipeline_mode<synchronous>, transform_indices = @transform_7, window_bounds = array<i64: 32, 128>}, {pipeline_mode = #tpu.pipeline_mode<synchronous>, transform_indices = @transform_8, window_bounds = array<i64: 48, 32>}, {pipeline_mode = #tpu.pipeline_mode<synchronous>, transform_indices = @transform_9, window_bounds = array<i64: 1, 32>}, {pipeline_mode = #tpu.pipeline_mode<synchronous>, transform_indices = @transform_10, window_bounds = array<i64: 32, 32>}, {pipeline_mode = #tpu.pipeline_mode<synchronous>, transform_indices = @transform_11, window_bounds = array<i64: 16, 32>}, {pipeline_mode = #tpu.pipeline_mode<synchronous>, transform_indices = @transform_12, window_bounds = array<i64: 1, 32>}, {pipeline_mode = #tpu.pipeline_mode<synchronous>, transform_indices = @transform_13, window_bounds = array<i64: 32, 128>}, {transform_indices = @transform_14, window_bounds = array<i64: 8, 128>}]} {
    %c0 = arith.constant 0 : index
    %c0_0 = arith.constant 0 : index
    %0 = vector.load %arg5[%c0, %c0_0] : memref<32x32xf32, #tpu.memory_space<vmem>>, vector<32x32xf32>
    %c0_1 = arith.constant 0 : index
    %c0_2 = arith.constant 0 : index
    %1 = vector.load %arg6[%c0_1, %c0_2] : memref<1x32xf32, #tpu.memory_space<vmem>>, vector<1x32xf32>
    %c0_3 = arith.constant 0 : index
    %c0_4 = arith.constant 0 : index
    %2 = vector.load %arg1[%c0_3, %c0_4] : memref<8x32xf32, #tpu.memory_space<vmem>>, vector<8x32xf32>
    %cst = arith.constant dense<0.000000e+00> : vector<8x32xf32>
    %3 = tpu.matmul %2, %0, %cst {dimension_numbers = #tpu.dot_dimension_numbers<[1], [0], [0], [1], [0, 0, 1, 1], [], []>} : vector<8x32xf32>, vector<32x32xf32>, vector<8x32xf32> -> vector<8x32xf32>
    %4 = vector.broadcast %1 : vector<1x32xf32> to vector<8x32xf32>
    %5 = arith.addf %3, %4 : vector<8x32xf32>
    %cst_5 = arith.constant 0.000000e+00 : f32
    %6 = vector.broadcast %cst_5 : f32 to vector<8x32xf32>
    %7 = arith.maximumf %5, %6 : vector<8x32xf32>
    %c0_6 = arith.constant 0 : index
    %c0_7 = arith.constant 0 : index
    %8 = vector.load %arg2[%c0_6, %c0_7] : memref<8x32xf32, #tpu.memory_space<vmem>>, vector<8x32xf32>
    %cst_8 = arith.constant dense<0.000000e+00> : vector<8x32xf32>
    %9 = tpu.matmul %8, %0, %cst_8 {dimension_numbers = #tpu.dot_dimension_numbers<[1], [0], [0], [1], [0, 0, 1, 1], [], []>} : vector<8x32xf32>, vector<32x32xf32>, vector<8x32xf32> -> vector<8x32xf32>
    %10 = vector.broadcast %1 : vector<1x32xf32> to vector<8x32xf32>
    %11 = arith.addf %9, %10 : vector<8x32xf32>
    %cst_9 = arith.constant 0.000000e+00 : f32
    %12 = vector.broadcast %cst_9 : f32 to vector<8x32xf32>
    %13 = arith.maximumf %11, %12 : vector<8x32xf32>
    %c0_10 = arith.constant 0 : index
    %c0_11 = arith.constant 0 : index
    %14 = vector.load %arg3[%c0_10, %c0_11] : memref<8x48xf32, #tpu.memory_space<vmem>>, vector<8x48xf32>
    %c0_12 = arith.constant 0 : index
    %c0_13 = arith.constant 0 : index
    %15 = vector.load %arg9[%c0_12, %c0_13] : memref<48x32xf32, #tpu.memory_space<vmem>>, vector<48x32xf32>
    %cst_14 = arith.constant dense<0.000000e+00> : vector<8x32xf32>
    %16 = tpu.matmul %14, %15, %cst_14 {dimension_numbers = #tpu.dot_dimension_numbers<[1], [0], [0], [1], [0, 0, 1, 1], [], []>} : vector<8x48xf32>, vector<48x32xf32>, vector<8x32xf32> -> vector<8x32xf32>
    %c0_15 = arith.constant 0 : index
    %c0_16 = arith.constant 0 : index
    %17 = vector.load %arg10[%c0_15, %c0_16] : memref<1x32xf32, #tpu.memory_space<vmem>>, vector<1x32xf32>
    %18 = vector.broadcast %17 : vector<1x32xf32> to vector<8x32xf32>
    %19 = arith.addf %16, %18 : vector<8x32xf32>
    %cst_17 = arith.constant 0.000000e+00 : f32
    %20 = vector.broadcast %cst_17 : f32 to vector<8x32xf32>
    %21 = arith.maximumf %19, %20 : vector<8x32xf32>
    %c0_18 = arith.constant 0 : index
    %c0_19 = arith.constant 0 : index
    %22 = vector.load %arg11[%c0_18, %c0_19] : memref<32x32xf32, #tpu.memory_space<vmem>>, vector<32x32xf32>
    %cst_20 = arith.constant dense<0.000000e+00> : vector<8x32xf32>
    %23 = tpu.matmul %21, %22, %cst_20 {dimension_numbers = #tpu.dot_dimension_numbers<[1], [0], [0], [1], [0, 0, 1, 1], [], []>} : vector<8x32xf32>, vector<32x32xf32>, vector<8x32xf32> -> vector<8x32xf32>
    %c0_21 = arith.constant 0 : index
    %c0_22 = arith.constant 0 : index
    %24 = vector.load %arg4[%c0_21, %c0_22] : memref<8x16xf32, #tpu.memory_space<vmem>>, vector<8x16xf32>
    %c0_23 = arith.constant 0 : index
    %c0_24 = arith.constant 0 : index
    %25 = vector.load %arg12[%c0_23, %c0_24] : memref<16x32xf32, #tpu.memory_space<vmem>>, vector<16x32xf32>
    %cst_25 = arith.constant dense<0.000000e+00> : vector<8x32xf32>
    %26 = tpu.matmul %24, %25, %cst_25 {dimension_numbers = #tpu.dot_dimension_numbers<[1], [0], [0], [1], [0, 0, 1, 1], [], []>} : vector<8x16xf32>, vector<16x32xf32>, vector<8x32xf32> -> vector<8x32xf32>
    %27 = arith.addf %23, %26 : vector<8x32xf32>
    %c0_26 = arith.constant 0 : index
    %c0_27 = arith.constant 0 : index
    %28 = vector.load %arg13[%c0_26, %c0_27] : memref<1x32xf32, #tpu.memory_space<vmem>>, vector<1x32xf32>
    %29 = vector.broadcast %28 : vector<1x32xf32> to vector<8x32xf32>
    %30 = arith.addf %27, %29 : vector<8x32xf32>
    %cst_28 = arith.constant 0.000000e+00 : f32
    %31 = vector.broadcast %cst_28 : f32 to vector<8x32xf32>
    %32 = arith.maximumf %30, %31 : vector<8x32xf32>
    %c0_29 = arith.constant 0 : index
    %c0_30 = arith.constant 0 : index
    %33 = vector.load %arg7[%c0_29, %c0_30] : memref<32x128xf32, #tpu.memory_space<vmem>>, vector<32x128xf32>
    %cst_31 = arith.constant dense<0.000000e+00> : vector<8x128xf32>
    %34 = tpu.matmul %7, %33, %cst_31 {dimension_numbers = #tpu.dot_dimension_numbers<[1], [0], [0], [1], [0, 0, 1, 1], [], []>} : vector<8x32xf32>, vector<32x128xf32>, vector<8x128xf32> -> vector<8x128xf32>
    %c0_32 = arith.constant 0 : index
    %c0_33 = arith.constant 0 : index
    %35 = vector.load %arg8[%c0_32, %c0_33] : memref<32x128xf32, #tpu.memory_space<vmem>>, vector<32x128xf32>
    %cst_34 = arith.constant dense<0.000000e+00> : vector<8x128xf32>
    %36 = tpu.matmul %13, %35, %cst_34 {dimension_numbers = #tpu.dot_dimension_numbers<[1], [0], [0], [1], [0, 0, 1, 1], [], []>} : vector<8x32xf32>, vector<32x128xf32>, vector<8x128xf32> -> vector<8x128xf32>
    %37 = arith.addf %34, %36 : vector<8x128xf32>
    %c0_35 = arith.constant 0 : index
    %c0_36 = arith.constant 0 : index
    %38 = vector.load %arg14[%c0_35, %c0_36] : memref<32x128xf32, #tpu.memory_space<vmem>>, vector<32x128xf32>
    %cst_37 = arith.constant dense<0.000000e+00> : vector<8x128xf32>
    %39 = tpu.matmul %32, %38, %cst_37 {dimension_numbers = #tpu.dot_dimension_numbers<[1], [0], [0], [1], [0, 0, 1, 1], [], []>} : vector<8x32xf32>, vector<32x128xf32>, vector<8x128xf32> -> vector<8x128xf32>
    %40 = arith.addf %37, %39 : vector<8x128xf32>
    %c0_38 = arith.constant 0 : index
    %c0_39 = arith.constant 0 : index
    %41 = vector.load %arg15[%c0_38, %c0_39] : memref<8x128xf32, #tpu.memory_space<vmem>>, vector<8x128xf32>
    tpu.vector_store %arg15[%c0_38, %c0_39], %40 {strides = array<i32>} : memref<8x128xf32, #tpu.memory_space<vmem>>, vector<8x128xf32>,
    return
  }
  func.func @transform_0(%arg0: i32) -> (i32, i32) {
    %c0_i32 = arith.constant 0 : i32
    %c0_i32_0 = arith.constant 0 : i32
    return %arg0, %c0_i32 : i32, i32
  }
  func.func @transform_1(%arg0: i32) -> (i32, i32) {
    %c0_i32 = arith.constant 0 : i32
    %c0_i32_0 = arith.constant 0 : i32
    return %arg0, %c0_i32 : i32, i32
  }
  func.func @transform_2(%arg0: i32) -> (i32, i32) {
    %c0_i32 = arith.constant 0 : i32
    %c0_i32_0 = arith.constant 0 : i32
    return %arg0, %c0_i32 : i32, i32
  }
  func.func @transform_3(%arg0: i32) -> (i32, i32) {
    %c0_i32 = arith.constant 0 : i32
    %c0_i32_0 = arith.constant 0 : i32
    return %arg0, %c0_i32 : i32, i32
  }
  func.func @transform_4(%arg0: i32) -> (i32, i32) {
    %c0_i32 = arith.constant 0 : i32
    %c0_i32_0 = arith.constant 0 : i32
    %c0_i32_1 = arith.constant 0 : i32
    return %c0_i32, %c0_i32_0 : i32, i32
  }
  func.func @transform_5(%arg0: i32) -> (i32, i32) {
    %c0_i32 = arith.constant 0 : i32
    %c0_i32_0 = arith.constant 0 : i32
    %c0_i32_1 = arith.constant 0 : i32
    return %c0_i32, %c0_i32_0 : i32, i32
  }
  func.func @transform_6(%arg0: i32) -> (i32, i32) {
    %c0_i32 = arith.constant 0 : i32
    %c0_i32_0 = arith.constant 0 : i32
    %c0_i32_1 = arith.constant 0 : i32
    return %c0_i32, %c0_i32_0 : i32, i32
  }
  func.func @transform_7(%arg0: i32) -> (i32, i32) {
    %c0_i32 = arith.constant 0 : i32
    %c0_i32_0 = arith.constant 0 : i32
    %c0_i32_1 = arith.constant 0 : i32
    return %c0_i32, %c0_i32_0 : i32, i32
  }
  func.func @transform_8(%arg0: i32) -> (i32, i32) {
    %c0_i32 = arith.constant 0 : i32
    %c0_i32_0 = arith.constant 0 : i32
    %c0_i32_1 = arith.constant 0 : i32
    return %c0_i32, %c0_i32_0 : i32, i32
  }
  func.func @transform_9(%arg0: i32) -> (i32, i32) {
    %c0_i32 = arith.constant 0 : i32
    %c0_i32_0 = arith.constant 0 : i32
    %c0_i32_1 = arith.constant 0 : i32
    return %c0_i32, %c0_i32_0 : i32, i32
  }
  func.func @transform_10(%arg0: i32) -> (i32, i32) {
    %c0_i32 = arith.constant 0 : i32
    %c0_i32_0 = arith.constant 0 : i32
    %c0_i32_1 = arith.constant 0 : i32
    return %c0_i32, %c0_i32_0 : i32, i32
  }
  func.func @transform_11(%arg0: i32) -> (i32, i32) {
    %c0_i32 = arith.constant 0 : i32
    %c0_i32_0 = arith.constant 0 : i32
    %c0_i32_1 = arith.constant 0 : i32
    return %c0_i32, %c0_i32_0 : i32, i32
  }
  func.func @transform_12(%arg0: i32) -> (i32, i32) {
    %c0_i32 = arith.constant 0 : i32
    %c0_i32_0 = arith.constant 0 : i32
    %c0_i32_1 = arith.constant 0 : i32
    return %c0_i32, %c0_i32_0 : i32, i32
  }
  func.func @transform_13(%arg0: i32) -> (i32, i32) {
    %c0_i32 = arith.constant 0 : i32
    %c0_i32_0 = arith.constant 0 : i32
    %c0_i32_1 = arith.constant 0 : i32
    return %c0_i32, %c0_i32_0 : i32, i32
  }
  func.func @transform_14(%arg0: i32) -> (i32, i32) {
    %c0_i32 = arith.constant 0 : i32
    %c0_i32_0 = arith.constant 0 : i32
    return %arg0, %c0_i32 : i32, i32
  }
}

</mosaic_0001>

<llo_original>
// kernel: tpu_custom_call.1
$region0: #{tpu_custom_call.1}
  #allocation0 [shape = 'u32[]', space=smem, size = 0x4, offset = 0x4, fixed_abs, tag = 'smem constant byte address 0x4 - core index']
  #allocation1 [shape = 'u32[144,128]{1,0:T(1,128)}', space=vmem, size = 0x12000, scoped, tag = 'internal scratch']
  %s0 = inlined_call_operand.hbm [shape: f32[8,32], index: 0, kind: input, shape index: {}]
  %s1 = inlined_call_operand.hbm [shape: f32[8,32], index: 1, kind: input, shape index: {}]
  %s2 = inlined_call_operand.hbm [shape: f32[8,48], index: 2, kind: input, shape index: {}]
  %s3 = inlined_call_operand.hbm [shape: f32[8,16], index: 3, kind: input, shape index: {}]
  %s4 = inlined_call_operand.vmem [shape: f32[32,32], index: 4, kind: input, shape index: {}]
  %s5 = inlined_call_operand.vmem [shape: f32[1,32], index: 5, kind: input, shape index: {}]
  %s6 = inlined_call_operand.vmem [shape: f32[32,128], index: 6, kind: input, shape index: {}]
  %s7 = inlined_call_operand.vmem [shape: f32[32,128], index: 7, kind: input, shape index: {}]
  %s8 = inlined_call_operand.vmem [shape: f32[48,32], index: 8, kind: input, shape index: {}]
  %s9 = inlined_call_operand.hbm [shape: f32[1,32], index: 9, kind: input, shape index: {}]
  %s10 = inlined_call_operand.hbm [shape: f32[32,32], index: 10, kind: input, shape index: {}]
  %s11 = inlined_call_operand.hbm [shape: f32[16,32], index: 11, kind: input, shape index: {}]
  %s12 = inlined_call_operand.hbm [shape: f32[1,32], index: 12, kind: input, shape index: {}]
  %s13 = inlined_call_operand.vmem [shape: f32[32,128], index: 13, kind: input, shape index: {}]
  %s14 = inlined_call_operand.hbm [shape: f32[8,128], index: 14, kind: output, shape index: {}]
  %s15 = sld [smem:[#allocation0]]
  $region98: #{tpu_custom_call.1} parent=0
    _
  %s17 = ssub.s32 1, %s15
  %s18 = scalar_select 0, %s17, %s15
  $region1: #{tpu_custom_call.1} parent=0
    #allocation2 [shape = 'u8[4096]{0}', space=vmem, size = 0x1000, scoped, tag = 'input window, operand 0, single buffered']
    #allocation3 [shape = 's32[1]{0}', space=sflag, size = 0x4, scoped, tag = 'scoped memory for tpu_custom_call.1']
    #allocation4 [shape = 's32[1]{0}', space=sflag, size = 0x4, scoped, tag = 'scoped memory for tpu_custom_call.1']
    #allocation5 [shape = 'u8[4096]{0}', space=vmem, size = 0x1000, scoped, tag = 'input window, operand 1, single buffered']
    #allocation6 [shape = 's32[1]{0}', space=sflag, size = 0x4, scoped, tag = 'scoped memory for tpu_custom_call.1']
    #allocation7 [shape = 'u8[4096]{0}', space=vmem, size = 0x1000, scoped, tag = 'input window, operand 2, single buffered']
    #allocation8 [shape = 'u8[4096]{0}', space=vmem, size = 0x1000, scoped, tag = 'input window, operand 3, single buffered']
    #allocation9 [shape = 's32[1]{0}', space=sflag, size = 0x4, scoped, tag = 'scoped memory for tpu_custom_call.1']
    #allocation10 [shape = 'u8[512]{0}', space=vmem, size = 0x400, scoped, tag = 'input window, operand 9, single buffered']
    #allocation11 [shape = 'u8[16384]{0}', space=vmem, size = 0x4000, scoped, tag = 'input window, operand 10, single buffered']
    #allocation12 [shape = 's32[1]{0}', space=sflag, size = 0x4, scoped, tag = 'scoped memory for tpu_custom_call.1']
    #allocation13 [shape = 'u8[8192]{0}', space=vmem, size = 0x2000, scoped, tag = 'input window, operand 11, single buffered']
    #allocation14 [shape = 'u8[512]{0}', space=vmem, size = 0x400, scoped, tag = 'input window, operand 12, single buffered']
    #allocation15 [shape = 's32[1]{0}', space=sflag, size = 0x4, scoped, tag = 'scoped memory for tpu_custom_call.1']
    #allocation16 [shape = 'u8[4096]{0}', space=vmem, size = 0x1000, scoped, tag = 'output window, operand 0, single buffered']
    %19 = vsyncpa [#allocation3], 0
    %20 = vsyncpa [#allocation6], 0
    %21 = vsyncpa [#allocation9], 0
    %22 = vsyncpa [#allocation12], 0
    %23 = vsyncpa [#allocation15], 0
    %24 = vsyncpa [#allocation4], 0
    // Predicated region
    $region2: #{tpu_custom_call.1} parent=1 // pred_check
      _
    $region3: #{tpu_custom_call.1} parent=1 // pred_check_branch
      %26 = sbr.rel (0) target = $region5
    $region4: #{tpu_custom_call.1} parent=1 // pred_region
      %s28 = ssub.s32 128, 128
      %29 = vsyncadd [#allocation3], %s28
      %s31 = sshll.u32 [#allocation2], 4
      %s32 = int_to_ptr.vmem [resolvable:$true] %s31
      %34 = dma.hbm_to_vmem [thread:$0]  %s0, 128, %s32, [#allocation3]
    $region5: #{tpu_custom_call.1} parent=1 // pred_fallthru
      _
    // Predicated region
    $region6: #{tpu_custom_call.1} parent=1 // pred_check
      _
    $region7: #{tpu_custom_call.1} parent=1 // pred_check_branch
      %36 = sbr.rel (0) target = $region9
    $region8: #{tpu_custom_call.1} parent=1 // pred_region
      %s38 = ssub.s32 128, 128
      %39 = vsyncadd [#allocation6], %s38
      %s41 = sshll.u32 [#allocation5], 4
      %s42 = int_to_ptr.vmem [resolvable:$true] %s41
      %44 = dma.hbm_to_vmem [thread:$0]  %s1, 128, %s42, [#allocation6]
    $region9: #{tpu_custom_call.1} parent=1 // pred_fallthru
      _
    // Predicated region
    $region10: #{tpu_custom_call.1} parent=1 // pred_check
      _
    $region11: #{tpu_custom_call.1} parent=1 // pred_check_branch
      %46 = sbr.rel (0) target = $region13
    $region12: #{tpu_custom_call.1} parent=1 // pred_region
      %s48 = ssub.s32 128, 128
      %49 = vsyncadd [#allocation6], %s48
      %s51 = sshll.u32 [#allocation7], 4
      %s52 = int_to_ptr.vmem [resolvable:$true] %s51
      %54 = dma.hbm_to_vmem [thread:$0]  %s2, 128, %s52, [#allocation6]
    $region13: #{tpu_custom_call.1} parent=1 // pred_fallthru
      _
    // Predicated region
    $region14: #{tpu_custom_call.1} parent=1 // pred_check
      _
    $region15: #{tpu_custom_call.1} parent=1 // pred_check_branch
      %56 = sbr.rel (0) target = $region17
    $region16: #{tpu_custom_call.1} parent=1 // pred_region
      %s58 = ssub.s32 128, 128
      %59 = vsyncadd [#allocation9], %s58
      %s61 = sshll.u32 [#allocation8], 4
      %s62 = int_to_ptr.vmem [resolvable:$true] %s61
      %64 = dma.hbm_to_vmem [thread:$0]  %s3, 128, %s62, [#allocation9]
    $region17: #{tpu_custom_call.1} parent=1 // pred_fallthru
      _
    // Predicated region
    $region18: #{tpu_custom_call.1} parent=1 // pred_check
      _
    $region19: #{tpu_custom_call.1} parent=1 // pred_check_branch
      %66 = sbr.rel (0) target = $region21
    $region20: #{tpu_custom_call.1} parent=1 // pred_region
      _
    $region21: #{tpu_custom_call.1} parent=1 // pred_fallthru
      _
    // Predicated region
    $region22: #{tpu_custom_call.1} parent=1 // pred_check
      _
    $region23: #{tpu_custom_call.1} parent=1 // pred_check_branch
      %68 = sbr.rel (0) target = $region25
    $region24: #{tpu_custom_call.1} parent=1 // pred_region
      _
    $region25: #{tpu_custom_call.1} parent=1 // pred_fallthru
      _
    // Predicated region
    $region26: #{tpu_custom_call.1} parent=1 // pred_check
      _
    $region27: #{tpu_custom_call.1} parent=1 // pred_check_branch
      %70 = sbr.rel (0) target = $region29
    $region28: #{tpu_custom_call.1} parent=1 // pred_region
      _
    $region29: #{tpu_custom_call.1} parent=1 // pred_fallthru
      _
    // Predicated region
    $region30: #{tpu_custom_call.1} parent=1 // pred_check
      _
    $region31: #{tpu_custom_call.1} parent=1 // pred_check_branch
      %72 = sbr.rel (0) target = $region33
    $region32: #{tpu_custom_call.1} parent=1 // pred_region
      _
    $region33: #{tpu_custom_call.1} parent=1 // pred_fallthru
      _
    // Predicated region
    $region34: #{tpu_custom_call.1} parent=1 // pred_check
      _
    $region35: #{tpu_custom_call.1} parent=1 // pred_check_branch
      %74 = sbr.rel (0) target = $region37
    $region36: #{tpu_custom_call.1} parent=1 // pred_region
      _
    $region37: #{tpu_custom_call.1} parent=1 // pred_fallthru
      _
    // Predicated region
    $region38: #{tpu_custom_call.1} parent=1 // pred_check
      _
    $region39: #{tpu_custom_call.1} parent=1 // pred_check_branch
      %76 = sbr.rel (0) target = $region41
    $region40: #{tpu_custom_call.1} parent=1 // pred_region
      %s78 = ssub.s32 16, 16
      %79 = vsyncadd [#allocation9], %s78
      %s81 = sshll.u32 [#allocation10], 4
      %s82 = int_to_ptr.vmem [resolvable:$true] %s81
      %84 = dma.hbm_to_vmem [thread:$0]  %s9, 16, %s82, [#allocation9]
    $region41: #{tpu_custom_call.1} parent=1 // pred_fallthru
      _
    // Predicated region
    $region42: #{tpu_custom_call.1} parent=1 // pred_check
      _
    $region43: #{tpu_custom_call.1} parent=1 // pred_check_branch
      %86 = sbr.rel (0) target = $region45
    $region44: #{tpu_custom_call.1} parent=1 // pred_region
      %s88 = ssub.s32 512, 512
      %89 = vsyncadd [#allocation12], %s88
      %s90 = sshll.u32 [#allocation11], 4
      %s91 = int_to_ptr.vmem [resolvable:$true] %s90
      %96 = dma.hbm_to_vmem [thread:$0]  %s10, 512, %s91, [#allocation12], 128, 128, 8
    $region45: #{tpu_custom_call.1} parent=1 // pred_fallthru
      _
    // Predicated region
    $region46: #{tpu_custom_call.1} parent=1 // pred_check
      _
    $region47: #{tpu_custom_call.1} parent=1 // pred_check_branch
      %98 = sbr.rel (0) target = $region49
    $region48: #{tpu_custom_call.1} parent=1 // pred_region
      %s100 = ssub.s32 256, 256
      %101 = vsyncadd [#allocation12], %s100
      %s102 = sshll.u32 [#allocation13], 4
      %s103 = int_to_ptr.vmem [resolvable:$true] %s102
      %108 = dma.hbm_to_vmem [thread:$0]  %s11, 256, %s103, [#allocation12], 128, 128, 8
    $region49: #{tpu_custom_call.1} parent=1 // pred_fallthru
      _
    // Predicated region
    $region50: #{tpu_custom_call.1} parent=1 // pred_check
      _
    $region51: #{tpu_custom_call.1} parent=1 // pred_check_branch
      %110 = sbr.rel (0) target = $region53
    $region52: #{tpu_custom_call.1} parent=1 // pred_region
      %s112 = ssub.s32 16, 16
      %113 = vsyncadd [#allocation15], %s112
      %s115 = sshll.u32 [#allocation14], 4
      %s116 = int_to_ptr.vmem [resolvable:$true] %s115
      %118 = dma.hbm_to_vmem [thread:$0]  %s12, 16, %s116, [#allocation15]
    $region53: #{tpu_custom_call.1} parent=1 // pred_fallthru
      _
    // Predicated region
    $region54: #{tpu_custom_call.1} parent=1 // pred_check
      _
    $region55: #{tpu_custom_call.1} parent=1 // pred_check_branch
      %120 = sbr.rel (0) target = $region57
    $region56: #{tpu_custom_call.1} parent=1 // pred_region
      _
    $region57: #{tpu_custom_call.1} parent=1 // pred_fallthru
      _
    // Predicated region
    $region58: #{tpu_custom_call.1} parent=1 // pred_check
      _
    $region59: #{tpu_custom_call.1} parent=1 // pred_check_branch
      %122 = sbr.rel (0) target = $region61
    $region60: #{tpu_custom_call.1} parent=1 // pred_region
      %123 = dma.done [#allocation3], 128
    $region61: #{tpu_custom_call.1} parent=1 // pred_fallthru
      _
    // Predicated region
    $region62: #{tpu_custom_call.1} parent=1 // pred_check
      _
    $region63: #{tpu_custom_call.1} parent=1 // pred_check_branch
      %125 = sbr.rel (0) target = $region65
    $region64: #{tpu_custom_call.1} parent=1 // pred_region
      %126 = dma.done [#allocation6], 128
    $region65: #{tpu_custom_call.1} parent=1 // pred_fallthru
      _
    // Predicated region
    $region66: #{tpu_custom_call.1} parent=1 // pred_check
      _
    $region67: #{tpu_custom_call.1} parent=1 // pred_check_branch
      %128 = sbr.rel (0) target = $region69
    $region68: #{tpu_custom_call.1} parent=1 // pred_region
      %129 = dma.done [#allocation6], 128
    $region69: #{tpu_custom_call.1} parent=1 // pred_fallthru
      _
    // Predicated region
    $region70: #{tpu_custom_call.1} parent=1 // pred_check
      _
    $region71: #{tpu_custom_call.1} parent=1 // pred_check_branch
      %131 = sbr.rel (0) target = $region73
    $region72: #{tpu_custom_call.1} parent=1 // pred_region
      %132 = dma.done [#allocation9], 128
    $region73: #{tpu_custom_call.1} parent=1 // pred_fallthru
      _
    // Predicated region
    $region74: #{tpu_custom_call.1} parent=1 // pred_check
      _
    $region75: #{tpu_custom_call.1} parent=1 // pred_check_branch
      %134 = sbr.rel (0) target = $region77
    $region76: #{tpu_custom_call.1} parent=1 // pred_region
      %135 = dma.done [#allocation9], 16
    $region77: #{tpu_custom_call.1} parent=1 // pred_fallthru
      _
    // Predicated region
    $region78: #{tpu_custom_call.1} parent=1 // pred_check
      _
    $region79: #{tpu_custom_call.1} parent=1 // pred_check_branch
      %137 = sbr.rel (0) target = $region81
    $region80: #{tpu_custom_call.1} parent=1 // pred_region
      %138 = dma.done [#allocation12], 512
    $region81: #{tpu_custom_call.1} parent=1 // pred_fallthru
      _
    // Predicated region
    $region82: #{tpu_custom_call.1} parent=1 // pred_check
      _
    $region83: #{tpu_custom_call.1} parent=1 // pred_check_branch
      %140 = sbr.rel (0) target = $region85
    $region84: #{tpu_custom_call.1} parent=1 // pred_region
      %141 = dma.done [#allocation12], 256
    $region85: #{tpu_custom_call.1} parent=1 // pred_fallthru
      _
    // Predicated region
    $region86: #{tpu_custom_call.1} parent=1 // pred_check
      _
    $region87: #{tpu_custom_call.1} parent=1 // pred_check_branch
      %143 = sbr.rel (0) target = $region89
    $region88: #{tpu_custom_call.1} parent=1 // pred_region
      %144 = dma.done [#allocation15], 16
    $region89: #{tpu_custom_call.1} parent=1 // pred_fallthru
      _
    %v145 = vld [vmem:[%s4] sm:$0xff]
    %v146 = vld [vmem:[%s4 + $0x8] sm:$0xff]
    %v147 = vld [vmem:[%s4 + $0x10] sm:$0xff]
    %v148 = vld [vmem:[%s4 + $0x18] sm:$0xff]
    %v149 = vld [vmem:[%s5] sm:$0x1]
    %v150 = vld [vmem:[#allocation2] sm:$0xff]
    %v152 = vlaneseq
    %v153 = vshrl.u32 %v152, 7
    %v154 = vsub.s32 0, %v153
    %v155 = vrot.slane %v149, %v154
    %vm157 = vcmask 261120
    %v159 = vsel %vm157, %v150, 0
    %161 = vmatprep.subr.mxu0 0.0
    %162 = vmatpush1.msra.mxu0 %v145
    %163 = vmatprep.subr.mxu0 0.0
    %164 = vmatpush1.msra.mxu0 %v146
    %165 = vmatprep.subr.mxu0 0.0
    %166 = vmatpush1.msra.mxu0 %v147
    %167 = vmatprep.subr.mxu0 0.0
    %168 = vmatpush1.msra.mxu0 %v148
    %169 = vmatprep.subr.mxu0 0.0
    %170 = vmatpush1.msra.mxu0 0.0
    %171 = vmatprep.subr.mxu0 0.0
    %172 = vmatpush1.msra.mxu0 0.0
    %173 = vmatprep.subr.mxu0 0.0
    %174 = vmatpush1.msra.mxu0 0.0
    %175 = vmatprep.subr.mxu0 0.0
    %176 = vmatpush1.msra.mxu0 0.0
    %177 = vmatprep.subr.mxu0 0.0
    %178 = vmatpush1.msra.mxu0 0.0
    %179 = vmatprep.subr.mxu0 0.0
    %180 = vmatpush1.msra.mxu0 0.0
    %181 = vmatprep.subr.mxu0 0.0
    %182 = vmatpush1.msra.mxu0 0.0
    %183 = vmatprep.subr.mxu0 0.0
    %184 = vmatpush1.msra.mxu0 0.0
    %185 = vmatprep.subr.mxu0 0.0
    %186 = vmatpush1.msra.mxu0 0.0
    %187 = vmatprep.subr.mxu0 0.0
    %188 = vmatpush1.msra.mxu0 0.0
    %189 = vmatprep.subr.mxu0 0.0
    %190 = vmatpush1.msra.mxu0 0.0
    %191 = vmatprep.subr.mxu0 0.0
    %192 = vmatpush1.msra.mxu0 0.0
    %193 = vmatprep.subr.mxu0 0.0
    %194 = vmatpush1.msra.mxu0 0.0
    %195 = vmatprep.subr.mxu0 0.0
    %196 = vmatpush1.msra.mxu0 0.0
    %197 = vmatprep.subr.mxu0 0.0
    %198 = vmatpush1.msra.mxu0 0.0
    %199 = vmatprep.subr.mxu0 0.0
    %200 = vmatpush1.msra.mxu0 0.0
    %201 = vmatprep.subr.mxu0 0.0
    %202 = vmatpush1.msra.mxu0 0.0
    %203 = vmatprep.subr.mxu0 0.0
    %204 = vmatpush1.msra.mxu0 0.0
    %205 = vmatprep.subr.mxu0 0.0
    %206 = vmatpush1.msra.mxu0 0.0
    %207 = vmatprep.subr.mxu0 0.0
    %208 = vmatpush1.msra.mxu0 0.0
    %209 = vmatprep.subr.mxu0 0.0
    %210 = vmatpush1.msra.mxu0 0.0
    %211 = vmatprep.subr.mxu0 0.0
    %212 = vmatpush1.msra.mxu0 0.0
    %213 = vmatprep.subr.mxu0 0.0
    %214 = vmatpush1.msra.mxu0 0.0
    %215 = vmatprep.subr.mxu0 0.0
    %216 = vmatpush1.msra.mxu0 0.0
    %217 = vmatprep.subr.mxu0 0.0
    %218 = vmatpush1.msra.mxu0 0.0
    %219 = vmatprep.subr.mxu0 0.0
    %220 = vmatpush1.msra.mxu0 0.0
    %221 = vmatprep.subr.mxu0 0.0
    %222 = vmatpush1.msra.mxu0 0.0
    %223 = vmatprep.subr.mxu0 0.0
    %224 = vmatpush1.msra.mxu0 0.0
    %225 = vmatprep.mubr.f32.mxu0 0.0
    %226 = vmatmul.mubr.f32.gmra.mrb[0].mxu0 %v159
    %v227 = vpop.f32.mrb[0].mxu0
    %v228 = vadd.f32 %v155, %v227
    %v229 = vpop.f32.mrb[0].mxu0
    %230 = vdwg.mxu0
    %v231 = vmax.f32 %v228, 0.0
    %v232 = vld [vmem:[#allocation5] sm:$0xff]
    %v234 = vsel %vm157, %v232, 0
    %236 = vmatprep.subr.mxu0 0.0
    %237 = vmatpush1.msra.mxu0 %v145
    %238 = vmatprep.subr.mxu0 0.0
    %239 = vmatpush1.msra.mxu0 %v146
    %240 = vmatprep.subr.mxu0 0.0
    %241 = vmatpush1.msra.mxu0 %v147
    %242 = vmatprep.subr.mxu0 0.0
    %243 = vmatpush1.msra.mxu0 %v148
    %244 = vmatprep.subr.mxu0 0.0
    %245 = vmatpush1.msra.mxu0 0.0
    %246 = vmatprep.subr.mxu0 0.0
    %247 = vmatpush1.msra.mxu0 0.0
    %248 = vmatprep.subr.mxu0 0.0
    %249 = vmatpush1.msra.mxu0 0.0
    %250 = vmatprep.subr.mxu0 0.0
    %251 = vmatpush1.msra.mxu0 0.0
    %252 = vmatprep.subr.mxu0 0.0
    %253 = vmatpush1.msra.mxu0 0.0
    %254 = vmatprep.subr.mxu0 0.0
    %255 = vmatpush1.msra.mxu0 0.0
    %256 = vmatprep.subr.mxu0 0.0
    %257 = vmatpush1.msra.mxu0 0.0
    %258 = vmatprep.subr.mxu0 0.0
    %259 = vmatpush1.msra.mxu0 0.0
    %260 = vmatprep.subr.mxu0 0.0
    %261 = vmatpush1.msra.mxu0 0.0
    %262 = vmatprep.subr.mxu0 0.0
    %263 = vmatpush1.msra.mxu0 0.0
    %264 = vmatprep.subr.mxu0 0.0
    %265 = vmatpush1.msra.mxu0 0.0
    %266 = vmatprep.subr.mxu0 0.0
    %267 = vmatpush1.msra.mxu0 0.0
    %268 = vmatprep.subr.mxu0 0.0
    %269 = vmatpush1.msra.mxu0 0.0
    %270 = vmatprep.subr.mxu0 0.0
    %271 = vmatpush1.msra.mxu0 0.0
    %272 = vmatprep.subr.mxu0 0.0
    %273 = vmatpush1.msra.mxu0 0.0
    %274 = vmatprep.subr.mxu0 0.0
    %275 = vmatpush1.msra.mxu0 0.0
    %276 = vmatprep.subr.mxu0 0.0
    %277 = vmatpush1.msra.mxu0 0.0
    %278 = vmatprep.subr.mxu0 0.0
    %279 = vmatpush1.msra.mxu0 0.0
    %280 = vmatprep.subr.mxu0 0.0
    %281 = vmatpush1.msra.mxu0 0.0
    %282 = vmatprep.subr.mxu0 0.0
    %283 = vmatpush1.msra.mxu0 0.0
    %284 = vmatprep.subr.mxu0 0.0
    %285 = vmatpush1.msra.mxu0 0.0
    %286 = vmatprep.subr.mxu0 0.0
    %287 = vmatpush1.msra.mxu0 0.0
    %288 = vmatprep.subr.mxu0 0.0
    %289 = vmatpush1.msra.mxu0 0.0
    %290 = vmatprep.subr.mxu0 0.0
    %291 = vmatpush1.msra.mxu0 0.0
    %292 = vmatprep.subr.mxu0 0.0
    %293 = vmatpush1.msra.mxu0 0.0
    %294 = vmatprep.subr.mxu0 0.0
    %295 = vmatpush1.msra.mxu0 0.0
    %296 = vmatprep.subr.mxu0 0.0
    %297 = vmatpush1.msra.mxu0 0.0
    %298 = vmatprep.subr.mxu0 0.0
    %299 = vmatpush1.msra.mxu0 0.0
    %300 = vmatprep.mubr.f32.mxu0 0.0
    %301 = vmatmul.mubr.f32.gmra.mrb[0].mxu0 %v234
    %v302 = vpop.f32.mrb[0].mxu0
    %v303 = vadd.f32 %v155, %v302
    %v304 = vpop.f32.mrb[0].mxu0
    %305 = vdwg.mxu0
    %v306 = vmax.f32 %v303, 0.0
    %v307 = vld [vmem:[#allocation7] sm:$0xff]
    %v308 = vld [vmem:[%s8] sm:$0xff]
    %v309 = vld [vmem:[%s8 + $0x8] sm:$0xff]
    %v310 = vld [vmem:[%s8 + $0x10] sm:$0xff]
    %v311 = vld [vmem:[%s8 + $0x18] sm:$0xff]
    %v312 = vld [vmem:[%s8 + $0x20] sm:$0xff]
    %v313 = vld [vmem:[%s8 + $0x28] sm:$0xff]
    %v314 = vld [vmem:[#allocation10] sm:$0x1]
    %v316 = vlaneseq
    %v317 = vshrl.u32 %v316, 7
    %v318 = vsub.s32 0, %v317
    %v319 = vrot.slane %v314, %v318
    %vm321 = vcmask 392192
    %v323 = vsel %vm321, %v307, 0
    %325 = vmatprep.subr.mxu0 0.0
    %326 = vmatpush1.msra.mxu0 %v308
    %327 = vmatprep.subr.mxu0 0.0
    %328 = vmatpush1.msra.mxu0 %v309
    %329 = vmatprep.subr.mxu0 0.0
    %330 = vmatpush1.msra.mxu0 %v310
    %331 = vmatprep.subr.mxu0 0.0
    %332 = vmatpush1.msra.mxu0 %v311
    %333 = vmatprep.subr.mxu0 0.0
    %334 = vmatpush1.msra.mxu0 %v312
    %335 = vmatprep.subr.mxu0 0.0
    %336 = vmatpush1.msra.mxu0 %v313
    %337 = vmatprep.subr.mxu0 0.0
    %338 = vmatpush1.msra.mxu0 0.0
    %339 = vmatprep.subr.mxu0 0.0
    %340 = vmatpush1.msra.mxu0 0.0
    %341 = vmatprep.subr.mxu0 0.0
    %342 = vmatpush1.msra.mxu0 0.0
    %343 = vmatprep.subr.mxu0 0.0
    %344 = vmatpush1.msra.mxu0 0.0
    %345 = vmatprep.subr.mxu0 0.0
    %346 = vmatpush1.msra.mxu0 0.0
    %347 = vmatprep.subr.mxu0 0.0
    %348 = vmatpush1.msra.mxu0 0.0
    %349 = vmatprep.subr.mxu0 0.0
    %350 = vmatpush1.msra.mxu0 0.0
    %351 = vmatprep.subr.mxu0 0.0
    %352 = vmatpush1.msra.mxu0 0.0
    %353 = vmatprep.subr.mxu0 0.0
    %354 = vmatpush1.msra.mxu0 0.0
    %355 = vmatprep.subr.mxu0 0.0
    %356 = vmatpush1.msra.mxu0 0.0
    %357 = vmatprep.subr.mxu0 0.0
    %358 = vmatpush1.msra.mxu0 0.0
    %359 = vmatprep.subr.mxu0 0.0
    %360 = vmatpush1.msra.mxu0 0.0
    %361 = vmatprep.subr.mxu0 0.0
    %362 = vmatpush1.msra.mxu0 0.0
    %363 = vmatprep.subr.mxu0 0.0
    %364 = vmatpush1.msra.mxu0 0.0
    %365 = vmatprep.subr.mxu0 0.0
    %366 = vmatpush1.msra.mxu0 0.0
    %367 = vmatprep.subr.mxu0 0.0
    %368 = vmatpush1.msra.mxu0 0.0
    %369 = vmatprep.subr.mxu0 0.0
    %370 = vmatpush1.msra.mxu0 0.0
    %371 = vmatprep.subr.mxu0 0.0
    %372 = vmatpush1.msra.mxu0 0.0
    %373 = vmatprep.subr.mxu0 0.0
    %374 = vmatpush1.msra.mxu0 0.0
    %375 = vmatprep.subr.mxu0 0.0
    %376 = vmatpush1.msra.mxu0 0.0
    %377 = vmatprep.subr.mxu0 0.0
    %378 = vmatpush1.msra.mxu0 0.0
    %379 = vmatprep.subr.mxu0 0.0
    %380 = vmatpush1.msra.mxu0 0.0
    %381 = vmatprep.subr.mxu0 0.0
    %382 = vmatpush1.msra.mxu0 0.0
    %383 = vmatprep.subr.mxu0 0.0
    %384 = vmatpush1.msra.mxu0 0.0
    %385 = vmatprep.subr.mxu0 0.0
    %386 = vmatpush1.msra.mxu0 0.0
    %387 = vmatprep.subr.mxu0 0.0
    %388 = vmatpush1.msra.mxu0 0.0
    %389 = vmatprep.mubr.f32.mxu0 0.0
    %390 = vmatmul.mubr.f32.gmra.mrb[0].mxu0 %v323
    %v391 = vpop.f32.mrb[0].mxu0
    %v392 = vadd.f32 %v319, %v391
    %v393 = vpop.f32.mrb[0].mxu0
    %394 = vdwg.mxu0
    %v395 = vmax.f32 %v392, 0.0
    %v396 = vld [vmem:[#allocation11] sm:$0xff]
    %v397 = vld [vmem:[#allocation11 + $0x8] sm:$0xff]
    %v398 = vld [vmem:[#allocation11 + $0x10] sm:$0xff]
    %v399 = vld [vmem:[#allocation11 + $0x18] sm:$0xff]
    %v400 = vld [vmem:[#allocation8] sm:$0xff]
    %v401 = vld [vmem:[#allocation13] sm:$0xff]
    %v402 = vld [vmem:[#allocation13 + $0x8] sm:$0xff]
    %vm403 = vcmask 130048
    %v405 = vsel %vm403, %v400, 0
    %407 = vmatprep.subr.mxu0 0.0
    %408 = vmatpush1.msra.mxu0 %v401
    %409 = vmatprep.subr.mxu0 0.0
    %410 = vmatpush1.msra.mxu0 %v402
    %411 = vmatprep.subr.mxu0 0.0
    %412 = vmatpush1.msra.mxu0 0.0
    %413 = vmatprep.subr.mxu0 0.0
    %414 = vmatpush1.msra.mxu0 0.0
    %415 = vmatprep.subr.mxu0 0.0
    %416 = vmatpush1.msra.mxu0 0.0
    %417 = vmatprep.subr.mxu0 0.0
    %418 = vmatpush1.msra.mxu0 0.0
    %419 = vmatprep.subr.mxu0 0.0
    %420 = vmatpush1.msra.mxu0 0.0
    %421 = vmatprep.subr.mxu0 0.0
    %422 = vmatpush1.msra.mxu0 0.0
    %423 = vmatprep.subr.mxu0 0.0
    %424 = vmatpush1.msra.mxu0 0.0
    %425 = vmatprep.subr.mxu0 0.0
    %426 = vmatpush1.msra.mxu0 0.0
    %427 = vmatprep.subr.mxu0 0.0
    %428 = vmatpush1.msra.mxu0 0.0
    %429 = vmatprep.subr.mxu0 0.0
    %430 = vmatpush1.msra.mxu0 0.0
    %431 = vmatprep.subr.mxu0 0.0
    %432 = vmatpush1.msra.mxu0 0.0
    %433 = vmatprep.subr.mxu0 0.0
    %434 = vmatpush1.msra.mxu0 0.0
    %435 = vmatprep.subr.mxu0 0.0
    %436 = vmatpush1.msra.mxu0 0.0
    %437 = vmatprep.subr.mxu0 0.0
    %438 = vmatpush1.msra.mxu0 0.0
    %439 = vmatprep.subr.mxu0 0.0
    %440 = vmatpush1.msra.mxu0 0.0
    %441 = vmatprep.subr.mxu0 0.0
    %442 = vmatpush1.msra.mxu0 0.0
    %443 = vmatprep.subr.mxu0 0.0
    %444 = vmatpush1.msra.mxu0 0.0
    %445 = vmatprep.subr.mxu0 0.0
    %446 = vmatpush1.msra.mxu0 0.0
    %447 = vmatprep.subr.mxu0 0.0
    %448 = vmatpush1.msra.mxu0 0.0
    %449 = vmatprep.subr.mxu0 0.0
    %450 = vmatpush1.msra.mxu0 0.0
    %451 = vmatprep.subr.mxu0 0.0
    %452 = vmatpush1.msra.mxu0 0.0
    %453 = vmatprep.subr.mxu0 0.0
    %454 = vmatpush1.msra.mxu0 0.0
    %455 = vmatprep.subr.mxu0 0.0
    %456 = vmatpush1.msra.mxu0 0.0
    %457 = vmatprep.subr.mxu0 0.0
    %458 = vmatpush1.msra.mxu0 0.0
    %459 = vmatprep.subr.mxu0 0.0
    %460 = vmatpush1.msra.mxu0 0.0
    %461 = vmatprep.subr.mxu0 0.0
    %462 = vmatpush1.msra.mxu0 0.0
    %463 = vmatprep.subr.mxu0 0.0
    %464 = vmatpush1.msra.mxu0 0.0
    %465 = vmatprep.subr.mxu0 0.0
    %466 = vmatpush1.msra.mxu0 0.0
    %467 = vmatprep.subr.mxu0 0.0
    %468 = vmatpush1.msra.mxu0 0.0
    %469 = vmatprep.subr.mxu0 0.0
    %470 = vmatpush1.msra.mxu0 0.0
    %471 = vmatprep.mubr.f32.mxu0 0.0
    %472 = vmatmul.mubr.f32.gmra.mrb[0].mxu0 %v405
    %v473 = vpop.f32.mrb[0].mxu0
    %v474 = vadd.f32 0.0, %v473
    %v475 = vpop.f32.mrb[0].mxu0
    %476 = vdwg.mxu0
    %v478 = vsel %vm157, %v395, 0
    %480 = vmatprep.subr.mxu0 0.0
    %481 = vmatpush1.msra.mxu0 %v396
    %482 = vmatprep.subr.mxu0 0.0
    %483 = vmatpush1.msra.mxu0 %v397
    %484 = vmatprep.subr.mxu0 0.0
    %485 = vmatpush1.msra.mxu0 %v398
    %486 = vmatprep.subr.mxu0 0.0
    %487 = vmatpush1.msra.mxu0 %v399
    %488 = vmatprep.subr.mxu0 0.0
    %489 = vmatpush1.msra.mxu0 0.0
    %490 = vmatprep.subr.mxu0 0.0
    %491 = vmatpush1.msra.mxu0 0.0
    %492 = vmatprep.subr.mxu0 0.0
    %493 = vmatpush1.msra.mxu0 0.0
    %494 = vmatprep.subr.mxu0 0.0
    %495 = vmatpush1.msra.mxu0 0.0
    %496 = vmatprep.subr.mxu0 0.0
    %497 = vmatpush1.msra.mxu0 0.0
    %498 = vmatprep.subr.mxu0 0.0
    %499 = vmatpush1.msra.mxu0 0.0
    %500 = vmatprep.subr.mxu0 0.0
    %501 = vmatpush1.msra.mxu0 0.0
    %502 = vmatprep.subr.mxu0 0.0
    %503 = vmatpush1.msra.mxu0 0.0
    %504 = vmatprep.subr.mxu0 0.0
    %505 = vmatpush1.msra.mxu0 0.0
    %506 = vmatprep.subr.mxu0 0.0
    %507 = vmatpush1.msra.mxu0 0.0
    %508 = vmatprep.subr.mxu0 0.0
    %509 = vmatpush1.msra.mxu0 0.0
    %510 = vmatprep.subr.mxu0 0.0
    %511 = vmatpush1.msra.mxu0 0.0
    %512 = vmatprep.subr.mxu0 0.0
    %513 = vmatpush1.msra.mxu0 0.0
    %514 = vmatprep.subr.mxu0 0.0
    %515 = vmatpush1.msra.mxu0 0.0
    %516 = vmatprep.subr.mxu0 0.0
    %517 = vmatpush1.msra.mxu0 0.0
    %518 = vmatprep.subr.mxu0 0.0
    %519 = vmatpush1.msra.mxu0 0.0
    %520 = vmatprep.subr.mxu0 0.0
    %521 = vmatpush1.msra.mxu0 0.0
    %522 = vmatprep.subr.mxu0 0.0
    %523 = vmatpush1.msra.mxu0 0.0
    %524 = vmatprep.subr.mxu0 0.0
    %525 = vmatpush1.msra.mxu0 0.0
    %526 = vmatprep.subr.mxu0 0.0
    %527 = vmatpush1.msra.mxu0 0.0
    %528 = vmatprep.subr.mxu0 0.0
    %529 = vmatpush1.msra.mxu0 0.0
    %530 = vmatprep.subr.mxu0 0.0
    %531 = vmatpush1.msra.mxu0 0.0
    %532 = vmatprep.subr.mxu0 0.0
    %533 = vmatpush1.msra.mxu0 0.0
    %534 = vmatprep.subr.mxu0 0.0
    %535 = vmatpush1.msra.mxu0 0.0
    %536 = vmatprep.subr.mxu0 0.0
    %537 = vmatpush1.msra.mxu0 0.0
    %538 = vmatprep.subr.mxu0 0.0
    %539 = vmatpush1.msra.mxu0 0.0
    %540 = vmatprep.subr.mxu0 0.0
    %541 = vmatpush1.msra.mxu0 0.0
    %542 = vmatprep.subr.mxu0 0.0
    %543 = vmatpush1.msra.mxu0 0.0
    %544 = vmatprep.mubr.f32.mxu0 0.0
    %545 = vmatmul.mubr.f32.gmra.mrb[0].mxu0 %v478
    %v546 = vpop.f32.mrb[0].mxu0
    %v547 = vadd.f32 %v474, %v546
    %v548 = vpop.f32.mrb[0].mxu0
    %549 = vdwg.mxu0
    %v550 = vld [vmem:[#allocation14] sm:$0x1]
    %v552 = vlaneseq
    %v553 = vshrl.u32 %v552, 7
    %v554 = vsub.s32 0, %v553
    %v555 = vrot.slane %v550, %v554
    %v557 = vadd.f32 %v547, %v555
    %v558 = vmax.f32 %v557, 0.0
    %v559 = vld [vmem:[%s6] sm:$0xff]
    %v560 = vld [vmem:[%s6 + $0x8] sm:$0xff]
    %v561 = vld [vmem:[%s6 + $0x10] sm:$0xff]
    %v562 = vld [vmem:[%s6 + $0x18] sm:$0xff]
    %v563 = vld [vmem:[%s7] sm:$0xff]
    %v564 = vld [vmem:[%s7 + $0x8] sm:$0xff]
    %v565 = vld [vmem:[%s7 + $0x10] sm:$0xff]
    %v566 = vld [vmem:[%s7 + $0x18] sm:$0xff]
    %v568 = vsel %vm157, %v306, 0
    %570 = vmatprep.subr.mxu0 0.0
    %571 = vmatpush1.msra.mxu0 %v563
    %572 = vmatprep.subr.mxu0 0.0
    %573 = vmatpush1.msra.mxu0 %v564
    %574 = vmatprep.subr.mxu0 0.0
    %575 = vmatpush1.msra.mxu0 %v565
    %576 = vmatprep.subr.mxu0 0.0
    %577 = vmatpush1.msra.mxu0 %v566
    %578 = vmatprep.subr.mxu0 0.0
    %579 = vmatpush1.msra.mxu0 0.0
    %580 = vmatprep.subr.mxu0 0.0
    %581 = vmatpush1.msra.mxu0 0.0
    %582 = vmatprep.subr.mxu0 0.0
    %583 = vmatpush1.msra.mxu0 0.0
    %584 = vmatprep.subr.mxu0 0.0
    %585 = vmatpush1.msra.mxu0 0.0
    %586 = vmatprep.subr.mxu0 0.0
    %587 = vmatpush1.msra.mxu0 0.0
    %588 = vmatprep.subr.mxu0 0.0
    %589 = vmatpush1.msra.mxu0 0.0
    %590 = vmatprep.subr.mxu0 0.0
    %591 = vmatpush1.msra.mxu0 0.0
    %592 = vmatprep.subr.mxu0 0.0
    %593 = vmatpush1.msra.mxu0 0.0
    %594 = vmatprep.subr.mxu0 0.0
    %595 = vmatpush1.msra.mxu0 0.0
    %596 = vmatprep.subr.mxu0 0.0
    %597 = vmatpush1.msra.mxu0 0.0
    %598 = vmatprep.subr.mxu0 0.0
    %599 = vmatpush1.msra.mxu0 0.0
    %600 = vmatprep.subr.mxu0 0.0
    %601 = vmatpush1.msra.mxu0 0.0
    %602 = vmatprep.subr.mxu0 0.0
    %603 = vmatpush1.msra.mxu0 0.0
    %604 = vmatprep.subr.mxu0 0.0
    %605 = vmatpush1.msra.mxu0 0.0
    %606 = vmatprep.subr.mxu0 0.0
    %607 = vmatpush1.msra.mxu0 0.0
    %608 = vmatprep.subr.mxu0 0.0
    %609 = vmatpush1.msra.mxu0 0.0
    %610 = vmatprep.subr.mxu0 0.0
    %611 = vmatpush1.msra.mxu0 0.0
    %612 = vmatprep.subr.mxu0 0.0
    %613 = vmatpush1.msra.mxu0 0.0
    %614 = vmatprep.subr.mxu0 0.0
    %615 = vmatpush1.msra.mxu0 0.0
    %616 = vmatprep.subr.mxu0 0.0
    %617 = vmatpush1.msra.mxu0 0.0
    %618 = vmatprep.subr.mxu0 0.0
    %619 = vmatpush1.msra.mxu0 0.0
    %620 = vmatprep.subr.mxu0 0.0
    %621 = vmatpush1.msra.mxu0 0.0
    %622 = vmatprep.subr.mxu0 0.0
    %623 = vmatpush1.msra.mxu0 0.0
    %624 = vmatprep.subr.mxu0 0.0
    %625 = vmatpush1.msra.mxu0 0.0
    %626 = vmatprep.subr.mxu0 0.0
    %627 = vmatpush1.msra.mxu0 0.0
    %628 = vmatprep.subr.mxu0 0.0
    %629 = vmatpush1.msra.mxu0 0.0
    %630 = vmatprep.subr.mxu0 0.0
    %631 = vmatpush1.msra.mxu0 0.0
    %632 = vmatprep.subr.mxu0 0.0
    %633 = vmatpush1.msra.mxu0 0.0
    %634 = vmatprep.mubr.f32.mxu0 0.0
    %635 = vmatmul.mubr.f32.gmra.mrb[0].mxu0 %v568
    %v636 = vpop.f32.mrb[0].mxu0
    %v637 = vadd.f32 0.0, %v636
    %v638 = vpop.f32.mrb[0].mxu0
    %639 = vdwg.mxu0
    %v641 = vsel %vm157, %v231, 0
    %643 = vmatprep.subr.mxu0 0.0
    %644 = vmatpush1.msra.mxu0 %v559
    %645 = vmatprep.subr.mxu0 0.0
    %646 = vmatpush1.msra.mxu0 %v560
    %647 = vmatprep.subr.mxu0 0.0
    %648 = vmatpush1.msra.mxu0 %v561
    %649 = vmatprep.subr.mxu0 0.0
    %650 = vmatpush1.msra.mxu0 %v562
    %651 = vmatprep.subr.mxu0 0.0
    %652 = vmatpush1.msra.mxu0 0.0
    %653 = vmatprep.subr.mxu0 0.0
    %654 = vmatpush1.msra.mxu0 0.0
    %655 = vmatprep.subr.mxu0 0.0
    %656 = vmatpush1.msra.mxu0 0.0
    %657 = vmatprep.subr.mxu0 0.0
    %658 = vmatpush1.msra.mxu0 0.0
    %659 = vmatprep.subr.mxu0 0.0
    %660 = vmatpush1.msra.mxu0 0.0
    %661 = vmatprep.subr.mxu0 0.0
    %662 = vmatpush1.msra.mxu0 0.0
    %663 = vmatprep.subr.mxu0 0.0
    %664 = vmatpush1.msra.mxu0 0.0
    %665 = vmatprep.subr.mxu0 0.0
    %666 = vmatpush1.msra.mxu0 0.0
    %667 = vmatprep.subr.mxu0 0.0
    %668 = vmatpush1.msra.mxu0 0.0
    %669 = vmatprep.subr.mxu0 0.0
    %670 = vmatpush1.msra.mxu0 0.0
    %671 = vmatprep.subr.mxu0 0.0
    %672 = vmatpush1.msra.mxu0 0.0
    %673 = vmatprep.subr.mxu0 0.0
    %674 = vmatpush1.msra.mxu0 0.0
    %675 = vmatprep.subr.mxu0 0.0
    %676 = vmatpush1.msra.mxu0 0.0
    %677 = vmatprep.subr.mxu0 0.0
    %678 = vmatpush1.msra.mxu0 0.0
    %679 = vmatprep.subr.mxu0 0.0
    %680 = vmatpush1.msra.mxu0 0.0
    %681 = vmatprep.subr.mxu0 0.0
    %682 = vmatpush1.msra.mxu0 0.0
    %683 = vmatprep.subr.mxu0 0.0
    %684 = vmatpush1.msra.mxu0 0.0
    %685 = vmatprep.subr.mxu0 0.0
    %686 = vmatpush1.msra.mxu0 0.0
    %687 = vmatprep.subr.mxu0 0.0
    %688 = vmatpush1.msra.mxu0 0.0
    %689 = vmatprep.subr.mxu0 0.0
    %690 = vmatpush1.msra.mxu0 0.0
    %691 = vmatprep.subr.mxu0 0.0
    %692 = vmatpush1.msra.mxu0 0.0
    %693 = vmatprep.subr.mxu0 0.0
    %694 = vmatpush1.msra.mxu0 0.0
    %695 = vmatprep.subr.mxu0 0.0
    %696 = vmatpush1.msra.mxu0 0.0
    %697 = vmatprep.subr.mxu0 0.0
    %698 = vmatpush1.msra.mxu0 0.0
    %699 = vmatprep.subr.mxu0 0.0
    %700 = vmatpush1.msra.mxu0 0.0
    %701 = vmatprep.subr.mxu0 0.0
    %702 = vmatpush1.msra.mxu0 0.0
    %703 = vmatprep.subr.mxu0 0.0
    %704 = vmatpush1.msra.mxu0 0.0
    %705 = vmatprep.subr.mxu0 0.0
    %706 = vmatpush1.msra.mxu0 0.0
    %707 = vmatprep.mubr.f32.mxu0 0.0
    %708 = vmatmul.mubr.f32.gmra.mrb[0].mxu0 %v641
    %v709 = vpop.f32.mrb[0].mxu0
    %v710 = vadd.f32 %v637, %v709
    %v711 = vpop.f32.mrb[0].mxu0
    %712 = vdwg.mxu0
    %v713 = vld [vmem:[%s13] sm:$0xff]
    %v714 = vld [vmem:[%s13 + $0x8] sm:$0xff]
    %v715 = vld [vmem:[%s13 + $0x10] sm:$0xff]
    %v716 = vld [vmem:[%s13 + $0x18] sm:$0xff]
    %v718 = vsel %vm157, %v558, 0
    %720 = vmatprep.subr.mxu0 0.0
    %721 = vmatpush1.msra.mxu0 %v713
    %722 = vmatprep.subr.mxu0 0.0
    %723 = vmatpush1.msra.mxu0 %v714
    %724 = vmatprep.subr.mxu0 0.0
    %725 = vmatpush1.msra.mxu0 %v715
    %726 = vmatprep.subr.mxu0 0.0
    %727 = vmatpush1.msra.mxu0 %v716
    %728 = vmatprep.subr.mxu0 0.0
    %729 = vmatpush1.msra.mxu0 0.0
    %730 = vmatprep.subr.mxu0 0.0
    %731 = vmatpush1.msra.mxu0 0.0
    %732 = vmatprep.subr.mxu0 0.0
    %733 = vmatpush1.msra.mxu0 0.0
    %734 = vmatprep.subr.mxu0 0.0
    %735 = vmatpush1.msra.mxu0 0.0
    %736 = vmatprep.subr.mxu0 0.0
    %737 = vmatpush1.msra.mxu0 0.0
    %738 = vmatprep.subr.mxu0 0.0
    %739 = vmatpush1.msra.mxu0 0.0
    %740 = vmatprep.subr.mxu0 0.0
    %741 = vmatpush1.msra.mxu0 0.0
    %742 = vmatprep.subr.mxu0 0.0
    %743 = vmatpush1.msra.mxu0 0.0
    %744 = vmatprep.subr.mxu0 0.0
    %745 = vmatpush1.msra.mxu0 0.0
    %746 = vmatprep.subr.mxu0 0.0
    %747 = vmatpush1.msra.mxu0 0.0
    %748 = vmatprep.subr.mxu0 0.0
    %749 = vmatpush1.msra.mxu0 0.0
    %750 = vmatprep.subr.mxu0 0.0
    %751 = vmatpush1.msra.mxu0 0.0
    %752 = vmatprep.subr.mxu0 0.0
    %753 = vmatpush1.msra.mxu0 0.0
    %754 = vmatprep.subr.mxu0 0.0
    %755 = vmatpush1.msra.mxu0 0.0
    %756 = vmatprep.subr.mxu0 0.0
    %757 = vmatpush1.msra.mxu0 0.0
    %758 = vmatprep.subr.mxu0 0.0
    %759 = vmatpush1.msra.mxu0 0.0
    %760 = vmatprep.subr.mxu0 0.0
    %761 = vmatpush1.msra.mxu0 0.0
    %762 = vmatprep.subr.mxu0 0.0
    %763 = vmatpush1.msra.mxu0 0.0
    %764 = vmatprep.subr.mxu0 0.0
    %765 = vmatpush1.msra.mxu0 0.0
    %766 = vmatprep.subr.mxu0 0.0
    %767 = vmatpush1.msra.mxu0 0.0
    %768 = vmatprep.subr.mxu0 0.0
    %769 = vmatpush1.msra.mxu0 0.0
    %770 = vmatprep.subr.mxu0 0.0
    %771 = vmatpush1.msra.mxu0 0.0
    %772 = vmatprep.subr.mxu0 0.0
    %773 = vmatpush1.msra.mxu0 0.0
    %774 = vmatprep.subr.mxu0 0.0
    %775 = vmatpush1.msra.mxu0 0.0
    %776 = vmatprep.subr.mxu0 0.0
    %777 = vmatpush1.msra.mxu0 0.0
    %778 = vmatprep.subr.mxu0 0.0
    %779 = vmatpush1.msra.mxu0 0.0
    %780 = vmatprep.subr.mxu0 0.0
    %781 = vmatpush1.msra.mxu0 0.0
    %782 = vmatprep.subr.mxu0 0.0
    %783 = vmatpush1.msra.mxu0 0.0
    %784 = vmatprep.mubr.f32.mxu0 0.0
    %785 = vmatmul.mubr.f32.gmra.mrb[0].mxu0 %v718
    %v786 = vpop.f32.mrb[0].mxu0
    %v787 = vadd.f32 0.0, %v786
    %v788 = vpop.f32.mrb[0].mxu0
    %789 = vdwg.mxu0
    %v790 = vadd.f32 %v710, %v787
    %791 = vst [vmem:[#allocation16] sm:$0xff] %v790
    // Predicated region
    $region90: #{tpu_custom_call.1} parent=1 // pred_check
      _
    $region91: #{tpu_custom_call.1} parent=1 // pred_check_branch
      %793 = sbr.rel (0) target = $region93
    $region92: #{tpu_custom_call.1} parent=1 // pred_region
      %s795 = ssub.s32 128, 128
      %796 = vsyncadd [#allocation4], %s795
      %s798 = sshll.u32 [#allocation16], 4
      %s799 = int_to_ptr.vmem [resolvable:$true] %s798
      %801 = dma.vmem_to_hbm [thread:$0]  %s799, 128, %s14, [#allocation4]
    $region93: #{tpu_custom_call.1} parent=1 // pred_fallthru
      _
    // Predicated region
    $region94: #{tpu_custom_call.1} parent=1 // pred_check
      _
    $region95: #{tpu_custom_call.1} parent=1 // pred_check_branch
      %803 = sbr.rel (0) target = $region97
    $region96: #{tpu_custom_call.1} parent=1 // pred_region
      %804 = dma.done [#allocation4], 128
    $region97: #{tpu_custom_call.1} parent=1 // pred_fallthru
      _
    %805 = vsyncpa [#allocation3], 1
    %806 = vsyncpa [#allocation6], 1
    %807 = vsyncpa [#allocation9], 1
    %808 = vsyncpa [#allocation12], 1
    %809 = vsyncpa [#allocation15], 1
    %810 = vsyncpa [#allocation4], 1

</llo_original>
